<compile_context>
chip_gen: v6e
topology: v6e:2x2x1
jax: 0.10.0
libtpu: 0.0.40
codegen_flags: <defaults>
</compile_context>

<pallas_src>
import numpy as np
import jax
import jax.numpy as jnp
from jax.experimental import pallas as pl
from jax.experimental.pallas import tpu as pltpu


def _roundup(a, m):
    return (a + m - 1) // m * m


def _sublane_multiple(itemsize):
    # Rows per vreg sublane group by element width.
    return {4: 8, 2: 16, 1: 32}.get(int(itemsize), 8)


def _vmem_capacity_bytes():
    try:
        return int(pltpu.get_tpu_info().vmem_capacity_bytes)
    except Exception:
        return 64 << 20  # conservative per-TC figure (v7x); v5e/v6e have 128 MiB


def _make_select_kernel(col_offsets, widths):
    """Kernel: (TILE, C) x-slab @ (C, Npad) one-hot -> per-cluster (TILE, n_i) outputs."""
    def kernel(x_ref, s_ref, *o_refs):
        res = jnp.dot(
            x_ref[...], s_ref[...],
            preferred_element_type=jnp.float32,
            precision=jax.lax.Precision.HIGHEST,  # keep f32 channel copies exact
        )
        for o_ref, off, w in zip(o_refs, col_offsets, widths):
            # off is a multiple of 128 -> vreg-aligned lane slice (no cross-lane rotate).
            o_ref[...] = res[:, off:off + w].astype(o_ref.dtype)
    return kernel


def _pick_tile(bl, row_bytes_padded, sel_bytes_padded, sub, max_rows=None):
    """Rows of the flattened B*L axis per grid step."""
    cap = _vmem_capacity_bytes()
    # Reserve the (double-buffered) selection matrix + headroom, then spend ~60%
    # of capacity on the double-buffered x/output blocks.
    budget = int(cap * 0.6) - 2 * sel_bytes_padded
    budget = max(budget, 4 << 20)
    tile = max(sub, budget // max(2 * row_bytes_padded, 1))
    tile = min(tile, bl, 32768)
    if max_rows is not None:
        tile = min(tile, max_rows)
    if tile >= bl:
        # A single grid step would leave the second TensorCore idle on v7x: split
        # the flattened B*L axis into at least two steps whenever it is big enough.
        if bl >= 2 * sub:
            half = _roundup((bl + 1) // 2, sub)
            tile = half if half < bl else bl
        else:
            tile = bl
    if tile < bl:
        tile = max(sub, (tile // sub) * sub)  # block rows: dtype sublane multiple
    return tile


def select_channels(x_2d, sel, widths, col_offsets, *, max_tile_rows=None):
    """(B*L, C) @ one-hot (C, Npad) -> tuple of per-cluster (B*L, n_i) arrays, fused."""
    BL, C = x_2d.shape
    Npad = sel.shape[1]
    itemsize = x_2d.dtype.itemsize
    sub = _sublane_multiple(itemsize)

    # Padded (VMEM-resident) footprint per row of a block: x lanes + all output lanes.
    c_pad = _roundup(C, 128)
    w_pads = [_roundup(w, 128) for w in widths]
    row_bytes = (c_pad + sum(w_pads)) * itemsize
    sel_bytes = (_roundup(C, _sublane_multiple(sel.dtype.itemsize))
                 * Npad * sel.dtype.itemsize)

    tile = _pick_tile(BL, row_bytes, sel_bytes, sub, max_rows=max_tile_rows)
    grid = (pl.cdiv(BL, tile),)

    need = 2 * tile * row_bytes + 2 * sel_bytes + (4 << 20)
    cap = _vmem_capacity_bytes()
    vmem_limit = int(min(max(need, 16 << 20), int(cap * 0.9)))

    n_total = sum(widths)
    cost = pl.CostEstimate(
        flops=2 * BL * C * Npad,
        transcendentals=0,
        bytes_accessed=BL * C * itemsize + BL * n_total * itemsize + sel_bytes,
    )

    out_shape = tuple(jax.ShapeDtypeStruct((BL, w), x_2d.dtype) for w in widths)
    out_specs = tuple(pl.BlockSpec((tile, w), lambda i: (i, 0)) for w in widths)

    # TODO(synk): for very large C * num_cluster, single-buffer the constant
    # selection matrix (pipeline_mode=pl.Buffered(1)) and skip all-zero 128-lane
    # K-blocks of S via scalar prefetch to stay memory-bound; not needed at these sizes.
    return pl.pallas_call(
        _make_select_kernel(tuple(col_offsets), tuple(widths)),
        out_shape=out_shape,
        grid=grid,
        in_specs=[
            pl.BlockSpec((tile, C), lambda i: (i, 0)),   # x slab (rows x channels)
            pl.BlockSpec((C, Npad), lambda i: (0, 0)),   # selection matrix (resident)
        ],
        out_specs=out_specs,
        compiler_params=pltpu.CompilerParams(
            dimension_semantics=("parallel",),  # independent steps -> 2-TC shard on v7x
            vmem_limit_bytes=vmem_limit,
        ),
        cost_estimate=cost,
    )(x_2d, sel)


def clustering_forward(x, y_pred, num_cluster, *, max_tile_rows=None):
    """JAX/Pallas equivalent of Clustering.forward.

    x:       jnp array (B, L, C)
    y_pred:  numpy int array (C,) -- concrete (output shapes depend on it)
    returns: list of num_cluster jnp arrays of shape (B, L, n_i)
    """
    B, L, C = x.shape
    y_pred = np.asarray(y_pred)

    idx_lists = [np.nonzero(y_pred == yi)[0].astype(np.int64)
                 for yi in range(num_cluster)]
    total = int(sum(int(ii.shape[0]) for ii in idx_lists))

    # TODO(synk): torch.cat([]) raises for an empty cluster in PyTorch; here an
    # empty cluster yields a zero-width (B, L, 0) array instead.
    if total == 0:
        return [jnp.zeros((B, L, 0), x.dtype) for _ in range(num_cluster)]

    # Fast path: every cluster already a contiguous channel range -> plain lane
    # slices, no kernel, no copying of unselected channels.
    contiguous = all(
        ii.size == 0 or int(ii[-1]) - int(ii[0]) + 1 == int(ii.size)
        for ii in idx_lists
    )
    if contiguous:
        outs = []
        for ii in idx_lists:
            if ii.size == 0:
                outs.append(jnp.zeros((B, L, 0), x.dtype))
            else:
                s = int(ii[0])
                outs.append(jax.lax.slice_in_dim(x, s, s + int(ii.size), axis=2))
        return outs

    # One-hot selection matrix; each non-empty cluster's column block starts on a
    # 128-lane boundary so the per-cluster slice inside the kernel is vreg-aligned.
    nonempty = [(k, ii) for k, ii in enumerate(idx_lists) if ii.size > 0]
    widths, col_offsets = [], []
    off = 0
    for _, ii in nonempty:
        widths.append(int(ii.size))
        col_offsets.append(off)
        off += _roundup(int(ii.size), 128)
    n_pad_total = off

    sel_np = np.zeros((C, n_pad_total), dtype=np.float32)
    for (_, ii), o in zip(nonempty, col_offsets):
        sel_np[ii, o + np.arange(ii.size)] = 1.0
    sel = jnp.asarray(sel_np, dtype=x.dtype)

    # TODO(synk): non-finite values (inf/nan) in *unselected* channels would leak
    # NaNs through the one-hot matmul (0 * inf); a pure gather path would not.
    x_2d = x.reshape(B * L, C)  # free view (leading dims collapse)
    gathered = select_channels(x_2d, sel, widths, col_offsets,
                               max_tile_rows=max_tile_rows)

    outs = [jnp.zeros((B, L, 0), x.dtype) for _ in range(num_cluster)]
    for (k, ii), g in zip(nonempty, gathered):
        outs[k] = g.reshape(B, L, int(ii.size))  # free view (split leading dim)
    return outs


def _reference(x_np, y_pred, num_cluster):
    return [x_np[:, :, np.nonzero(y_pred == yi)[0]] for yi in range(num_cluster)]


def _check(outs, x_arr, y_pred, num_cluster):
    refs = _reference(np.asarray(x_arr), y_pred, num_cluster)
    for got, ref in zip(outs, refs):
        got = np.asarray(jax.block_until_ready(got))
        assert got.shape == ref.shape, (got.shape, ref.shape)
        np.testing.assert_allclose(got.astype(np.float32), ref.astype(np.float32),
                                   rtol=0, atol=0)


if __name__ == "__main__":
    key = jax.random.PRNGKey(0)
    k1, k2, k3 = jax.random.split(key, 3)

    # Case 1: interleaved clusters -> exercises the fused multi-output kernel
    # (grid of 2 steps so the parallel axis can shard across two TCs).
    B, L, C, num_cluster = 2, 16, 8, 3
    x = jax.random.normal(k1, (B, L, C), dtype=jnp.float32)
    y_pred = np.array([0, 1, 2, 0, 1, 2, 0, 1], dtype=np.int32)
    _check(clustering_forward(x, y_pred, num_cluster), x, y_pred, num_cluster)

    # Case 2: forced small tile -> partial last block + grid > 2.
    B2, L2, C2, nc2 = 2, 20, 6, 3
    x2 = jax.random.normal(k2, (B2, L2, C2), dtype=jnp.float32)
    y2 = np.array([2, 0, 1, 0, 2, 1], dtype=np.int32)
    _check(clustering_forward(x2, y2, nc2, max_tile_rows=16), x2, y2, nc2)

    # Case 3: channels already grouped per cluster -> zero-copy fast path.
    y3 = np.array([0, 0, 0, 1, 1, 2, 2, 2], dtype=np.int32)
    _check(clustering_forward(x, y3, num_cluster), x, y3, num_cluster)

    # Case 4: bf16 input -> exercises the dtype-specific sublane rounding (16-row tiles).
    x4 = jax.random.normal(k3, (B, L, C), dtype=jnp.float32).astype(jnp.bfloat16)
    _check(clustering_forward(x4, y_pred, num_cluster), x4, y_pred, num_cluster)

    print("KERNEL_OK")
</pallas_src>

<mosaic_0001>
module attributes {stable_mosaic.version = 11 : i64} {
  func.func @kernel(%arg0: i32, %arg1: memref<16x8xf32, #tpu.memory_space<vmem>>, %arg2: memref<8x384xf32, #tpu.memory_space<vmem>>, %arg3: memref<16x3xf32, #tpu.memory_space<vmem>>, %arg4: memref<16x3xf32, #tpu.memory_space<vmem>>, %arg5: memref<16x2xf32, #tpu.memory_space<vmem>>) attributes {dimension_semantics = [#tpu.dimension_semantics<parallel>], iteration_bounds = array<i64: 2>, scalar_prefetch = 0 : i64, scratch_operands = 0 : i64, tpu.core_type = #tpu.core_type<tc>, window_params = [{transform_indices = @transform_0, window_bounds = array<i64: 16, 8>}, {pipeline_mode = #tpu.pipeline_mode<synchronous>, transform_indices = @transform_1, window_bounds = array<i64: 8, 384>}, {transform_indices = @transform_2, window_bounds = array<i64: 16, 3>}, {transform_indices = @transform_3, window_bounds = array<i64: 16, 3>}, {transform_indices = @transform_4, window_bounds = array<i64: 16, 2>}]} {
    %c0 = arith.constant 0 : index
    %c0_0 = arith.constant 0 : index
    %0 = vector.load %arg1[%c0, %c0_0] : memref<16x8xf32, #tpu.memory_space<vmem>>, vector<16x8xf32>
    %c0_1 = arith.constant 0 : index
    %c0_2 = arith.constant 0 : index
    %1 = vector.load %arg2[%c0_1, %c0_2] : memref<8x384xf32, #tpu.memory_space<vmem>>, vector<8x384xf32>
    %cst = arith.constant dense<0.000000e+00> : vector<16x384xf32>
    %2 = tpu.matmul %0, %1, %cst {dimension_numbers = #tpu.dot_dimension_numbers<[1], [0], [0], [1], [0, 0, 1, 1], [], []>, precision = #tpu.contract_precision<fp32>} : vector<16x8xf32>, vector<8x384xf32>, vector<16x384xf32> -> vector<16x384xf32>
    %3 = vector.extract_strided_slice %2 {offsets = [0, 0], sizes = [16, 3], strides = [1, 1]} : vector<16x384xf32> to vector<16x3xf32>
    %c0_3 = arith.constant 0 : index
    %c0_4 = arith.constant 0 : index
    %4 = vector.load %arg3[%c0_3, %c0_4] : memref<16x3xf32, #tpu.memory_space<vmem>>, vector<16x3xf32>
    tpu.vector_store %arg3[%c0_3, %c0_4], %3 {strides = array<i32>} : memref<16x3xf32, #tpu.memory_space<vmem>>, vector<16x3xf32>,
    %5 = vector.extract_strided_slice %2 {offsets = [0, 128], sizes = [16, 3], strides = [1, 1]} : vector<16x384xf32> to vector<16x3xf32>
    %c0_5 = arith.constant 0 : index
    %c0_6 = arith.constant 0 : index
    %6 = vector.load %arg4[%c0_5, %c0_6] : memref<16x3xf32, #tpu.memory_space<vmem>>, vector<16x3xf32>
    tpu.vector_store %arg4[%c0_5, %c0_6], %5 {strides = array<i32>} : memref<16x3xf32, #tpu.memory_space<vmem>>, vector<16x3xf32>,
    %7 = vector.extract_strided_slice %2 {offsets = [0, 256], sizes = [16, 2], strides = [1, 1]} : vector<16x384xf32> to vector<16x2xf32>
    %c0_7 = arith.constant 0 : index
    %c0_8 = arith.constant 0 : index
    %8 = vector.load %arg5[%c0_7, %c0_8] : memref<16x2xf32, #tpu.memory_space<vmem>>, vector<16x2xf32>
    tpu.vector_store %arg5[%c0_7, %c0_8], %7 {strides = array<i32>} : memref<16x2xf32, #tpu.memory_space<vmem>>, vector<16x2xf32>,
    return
  }
  func.func @transform_0(%arg0: i32) -> (i32, i32) {
    %c0_i32 = arith.constant 0 : i32
    %c0_i32_0 = arith.constant 0 : i32
    return %arg0, %c0_i32 : i32, i32
  }
  func.func @transform_1(%arg0: i32) -> (i32, i32) {
    %c0_i32 = arith.constant 0 : i32
    %c0_i32_0 = arith.constant 0 : i32
    %c0_i32_1 = arith.constant 0 : i32
    return %c0_i32, %c0_i32_0 : i32, i32
  }
  func.func @transform_2(%arg0: i32) -> (i32, i32) {
    %c0_i32 = arith.constant 0 : i32
    %c0_i32_0 = arith.constant 0 : i32
    return %arg0, %c0_i32 : i32, i32
  }
  func.func @transform_3(%arg0: i32) -> (i32, i32) {
    %c0_i32 = arith.constant 0 : i32
    %c0_i32_0 = arith.constant 0 : i32
    return %arg0, %c0_i32 : i32, i32
  }
  func.func @transform_4(%arg0: i32) -> (i32, i32) {
    %c0_i32 = arith.constant 0 : i32
    %c0_i32_0 = arith.constant 0 : i32
    return %arg0, %c0_i32 : i32, i32
  }
}

</mosaic_0001>

<llo_original>
// kernel: tpu_custom_call.1
$region0: #{tpu_custom_call.1}
  #allocation0 [shape = 'u32[]', space=smem, size = 0x4, offset = 0x4, fixed_abs, tag = 'smem constant byte address 0x4 - core index']
  #allocation1 [shape = 'u32[144,128]{1,0:T(1,128)}', space=vmem, size = 0x12000, scoped, tag = 'internal scratch']
  %s0 = inlined_call_operand.vmem [shape: f32[32,8], index: 0, kind: input, shape index: {}]
  %s1 = inlined_call_operand.vmem [shape: f32[8,384], index: 1, kind: input, shape index: {}]
  %s2 = inlined_call_operand.vmem [shape: f32[32,3], index: 2, kind: output, shape index: {0}]
  %s3 = inlined_call_operand.vmem [shape: f32[32,3], index: 3, kind: output, shape index: {1}]
  %s4 = inlined_call_operand.vmem [shape: f32[32,2], index: 4, kind: output, shape index: {2}]
  %5 = xla_tuple %s2, %s3, %s4
  %s6 = sld [smem:[#allocation0]]
  $region57: #{tpu_custom_call.1} parent=0
    _
  %s8 = ssub.s32 1, %s6
  %s9 = scalar_select 0, %s8, %s6
  loop: start=0, step=1, limit=4
  $region2: #{tpu_custom_call.1} parent=0 // loop_pre_header
    _
  $region3: #{tpu_custom_call.1} parent=0 // loop_header
    %s11 = sphi 0, %s15
    %p12 = scmp.ge.s32.totalorder %s11, 4
    %s21 = sphi 0, %s23
    %s24 = sphi 0, %s21
    %s25 = sphi 0, %s24
    %s41 = sphi 0, %s25
    %s45 = sphi 0, %s45
    %s47 = sphi 0, %s45
    %s48 = sphi 0, %s47
    %s62 = sphi 0, %s48
    %s68 = sphi 0, %s70
    %s71 = sphi 0, %s68
    %s72 = sphi 0, %s71
    %s88 = sphi 0, %s72
    %s94 = sphi 0, %s96
    %s97 = sphi 0, %s94
    %s98 = sphi 0, %s97
    %s114 = sphi 0, %s98
    %s120 = sphi 0, %s122
    %s123 = sphi 0, %s120
    %s124 = sphi 0, %s123
    %s140 = sphi 0, %s124
  $region4: #{tpu_custom_call.1} parent=0 // loop_header_branch
    %14 = sbr.rel (%p12) target = $region8
  $region5: #{tpu_custom_call.1} parent=0 // loop_body
    %s16 = ssub.s32 %s11, 1
    %s17 = ssub.s32 %s11, 2
    %s18 = sadd.s32 %s11, 1
    %s19 = ssub.s32 %s11, %s18
    %p20 = scmp.eq.s32.totalorder %s19, 0
    %s22 = sadd.s32 %s21, 1
    %s23 = scalar_select %p20, %s21, %s22
    %p26 = pneg %p20
    %p27 = scmp.eq.s32.totalorder %s11, 1
    %p28 = por %p26, %p27
    %p29 = scmp.ne.s32.totalorder %s21, %s24
    %p30 = scmp.eq.s32.totalorder %s11, 0
    %p31 = por %p29, %p30
    %p32 = scmp.ne.s32.totalorder %s21, %s24
    %p33 = scmp.eq.s32.totalorder %s16, 1
    %p34 = por %p32, %p33
    %p35 = scmp.ne.s32.totalorder %s24, %s25
    %p36 = scmp.eq.s32.totalorder %s16, 0
    %p37 = por %p35, %p36
    %p38 = scmp.ne.s32.totalorder %s24, %s25
    %p39 = scmp.eq.s32.totalorder %s17, 1
    %p40 = por %p38, %p39
    %p42 = scmp.ne.s32.totalorder %s25, %s41
    %p43 = scmp.eq.s32.totalorder %s17, 0
    %p44 = por %p42, %p43
    %s46 = sadd.s32 %s45, 1
    %p49 = scmp.eq.s32.totalorder %s11, 1
    %p50 = scmp.ne.s32.totalorder %s45, %s47
    %p51 = scmp.eq.s32.totalorder %s11, 0
    %p52 = por %p50, %p51
    %p53 = scmp.ne.s32.totalorder %s45, %s47
    %p54 = scmp.eq.s32.totalorder %s16, 1
    %p55 = por %p53, %p54
    %p56 = scmp.ne.s32.totalorder %s47, %s48
    %p57 = scmp.eq.s32.totalorder %s16, 0
    %p58 = por %p56, %p57
    %p59 = scmp.ne.s32.totalorder %s47, %s48
    %p60 = scmp.eq.s32.totalorder %s17, 1
    %p61 = por %p59, %p60
    %p63 = scmp.ne.s32.totalorder %s48, %s62
    %p64 = scmp.eq.s32.totalorder %s17, 0
    %p65 = por %p63, %p64
    %s66 = ssub.s32 %s11, %s18
    %p67 = scmp.eq.s32.totalorder %s66, 0
    %s69 = sadd.s32 %s68, 1
    %s70 = scalar_select %p67, %s68, %s69
    %p73 = pneg %p67
    %p74 = scmp.eq.s32.totalorder %s11, 1
    %p75 = por %p73, %p74
    %p76 = scmp.ne.s32.totalorder %s68, %s71
    %p77 = scmp.eq.s32.totalorder %s11, 0
    %p78 = por %p76, %p77
    %p79 = scmp.ne.s32.totalorder %s68, %s71
    %p80 = scmp.eq.s32.totalorder %s16, 1
    %p81 = por %p79, %p80
    %p82 = scmp.ne.s32.totalorder %s71, %s72
    %p83 = scmp.eq.s32.totalorder %s16, 0
    %p84 = por %p82, %p83
    %p85 = scmp.ne.s32.totalorder %s71, %s72
    %p86 = scmp.eq.s32.totalorder %s17, 1
    %p87 = por %p85, %p86
    %p89 = scmp.ne.s32.totalorder %s72, %s88
    %p90 = scmp.eq.s32.totalorder %s17, 0
    %p91 = por %p89, %p90
    %s92 = ssub.s32 %s11, %s18
    %p93 = scmp.eq.s32.totalorder %s92, 0
    %s95 = sadd.s32 %s94, 1
    %s96 = scalar_select %p93, %s94, %s95
    %p99 = pneg %p93
    %p100 = scmp.eq.s32.totalorder %s11, 1
    %p101 = por %p99, %p100
    %p102 = scmp.ne.s32.totalorder %s94, %s97
    %p103 = scmp.eq.s32.totalorder %s11, 0
    %p104 = por %p102, %p103
    %p105 = scmp.ne.s32.totalorder %s94, %s97
    %p106 = scmp.eq.s32.totalorder %s16, 1
    %p107 = por %p105, %p106
    %p108 = scmp.ne.s32.totalorder %s97, %s98
    %p109 = scmp.eq.s32.totalorder %s16, 0
    %p110 = por %p108, %p109
    %p111 = scmp.ne.s32.totalorder %s97, %s98
    %p112 = scmp.eq.s32.totalorder %s17, 1
    %p113 = por %p111, %p112
    %p115 = scmp.ne.s32.totalorder %s98, %s114
    %p116 = scmp.eq.s32.totalorder %s17, 0
    %p117 = por %p115, %p116
    %s118 = ssub.s32 %s11, %s18
    %p119 = scmp.eq.s32.totalorder %s118, 0
    %s121 = sadd.s32 %s120, 1
    %s122 = scalar_select %p119, %s120, %s121
    %p125 = pneg %p119
    %p126 = scmp.eq.s32.totalorder %s11, 1
    %p127 = por %p125, %p126
    %p128 = scmp.ne.s32.totalorder %s120, %s123
    %p129 = scmp.eq.s32.totalorder %s11, 0
    %p130 = por %p128, %p129
    %p131 = scmp.ne.s32.totalorder %s120, %s123
    %p132 = scmp.eq.s32.totalorder %s16, 1
    %p133 = por %p131, %p132
    %p134 = scmp.ne.s32.totalorder %s123, %s124
    %p135 = scmp.eq.s32.totalorder %s16, 0
    %p136 = por %p134, %p135
    %p137 = scmp.ne.s32.totalorder %s123, %s124
    %p138 = scmp.eq.s32.totalorder %s17, 1
    %p139 = por %p137, %p138
    %p141 = scmp.ne.s32.totalorder %s124, %s140
    %p142 = scmp.eq.s32.totalorder %s17, 0
    %p143 = por %p141, %p142
    %p144 = scmp.le.s32.totalorder 1, %s11
    %p145 = scmp.lt.s32.totalorder %s11, 3
    %p146 = pnand %p144, %p145
    %p147 = pneg %p146
    // Predicated region
    $region9: #{tpu_custom_call.1} parent=5 // pred_check
      _
    $region10: #{tpu_custom_call.1} parent=5 // pred_check_branch
      %149 = sbr.rel (%p146) target = $region12
    $region11: #{tpu_custom_call.1} parent=5 // pred_region
      %s150 = ssub.s32 %s11, 1
      // Predicated region
      $region13: #{tpu_custom_call.1} parent=11 // pred_check
        %p151 = pneg %p58
      $region14: #{tpu_custom_call.1} parent=11 // pred_check_branch
        %153 = sbr.rel (%p151) target = $region16
      $region15: #{tpu_custom_call.1} parent=11 // pred_region
        _
      $region16: #{tpu_custom_call.1} parent=11 // pred_fallthru
        _
    $region12: #{tpu_custom_call.1} parent=5 // pred_fallthru
      _
    %p154 = scmp.lt.s32.totalorder %s11, 2
    // Predicated region
    $region17: #{tpu_custom_call.1} parent=5 // pred_check
      %p155 = pneg %p154
    $region18: #{tpu_custom_call.1} parent=5 // pred_check_branch
      %157 = sbr.rel (%p155) target = $region20
    $region19: #{tpu_custom_call.1} parent=5 // pred_region
      // Predicated region
      $region21: #{tpu_custom_call.1} parent=19 // pred_check
        %p158 = pneg %p31
      $region22: #{tpu_custom_call.1} parent=19 // pred_check_branch
        %160 = sbr.rel (%p158) target = $region24
      $region23: #{tpu_custom_call.1} parent=19 // pred_region
        %s161 = smul.u32 2, %s11
        %p162 = scmp.lt.s32.totalorder %s161, 3
        %s163 = scalar_select %p162, %s161, 3
        %s164 = smul.addr %s163, 8
        %s165 = scalar_lea.vmem %s0, %s164
        %s166 = smul.u32 2, %s11
      $region24: #{tpu_custom_call.1} parent=19 // pred_fallthru
        _
    $region20: #{tpu_custom_call.1} parent=5 // pred_fallthru
      _
    %p167 = scmp.le.s32.totalorder 1, %s11
    %p168 = scmp.lt.s32.totalorder %s11, 3
    %p169 = pnand %p167, %p168
    %p170 = pneg %p169
    // Predicated region
    $region25: #{tpu_custom_call.1} parent=5 // pred_check
      _
    $region26: #{tpu_custom_call.1} parent=5 // pred_check_branch
      %172 = sbr.rel (%p169) target = $region28
    $region27: #{tpu_custom_call.1} parent=5 // pred_region
      %s173 = ssub.s32 %s11, 1
      %s174 = smul.u32 2, %s16
      %p175 = scmp.lt.s32.totalorder %s174, 3
      %s176 = scalar_select %p175, %s174, 3
      %s177 = smul.addr %s176, 8
      %s178 = scalar_lea.vmem %s0, %s177
      %p179 = pneg %p37
      %p180 = pneg %p34
      %p181 = pneg %p58
      %p182 = pneg %p55
      %p183 = pneg %p84
      %p184 = pneg %p81
      %s185 = smul.u32 2, %s16
      %p186 = scmp.lt.s32.totalorder %s185, 3
      %s187 = scalar_select %p186, %s185, 3
      %s188 = smul.addr %s187, 8
      %s189 = scalar_lea.vmem %s2, %s188
      %p190 = pneg %p110
      %p191 = pneg %p107
      %s192 = smul.u32 2, %s16
      %p193 = scmp.lt.s32.totalorder %s192, 3
      %s194 = scalar_select %p193, %s192, 3
      %s195 = smul.addr %s194, 8
      %s196 = scalar_lea.vmem %s3, %s195
      %p197 = pneg %p136
      %p198 = pneg %p133
      %s199 = smul.u32 2, %s16
      %p200 = scmp.lt.s32.totalorder %s199, 3
      %s201 = scalar_select %p200, %s199, 3
      %s202 = smul.addr %s201, 8
      %s203 = scalar_lea.vmem %s4, %s202
      %s204 = smul.u32 2, %s16
      %p205 = scmp.lt.s32.totalorder %s204, 3
      %s206 = scalar_select %p205, %s204, 3
      %s207 = smul.addr %s206, 8
      %s208 = scalar_lea.vmem %s0, %s207
      %s209 = smul.u32 2, %s16
      %s210 = smul.u32 2, %s16
      %p211 = scmp.lt.s32.totalorder %s210, 3
      %s212 = scalar_select %p211, %s210, 3
      %s213 = smul.addr %s212, 8
      %s214 = scalar_lea.vmem %s2, %s213
      %s215 = smul.u32 2, %s16
      %s216 = smul.u32 2, %s16
      %p217 = scmp.lt.s32.totalorder %s216, 3
      %s218 = scalar_select %p217, %s216, 3
      %s219 = smul.addr %s218, 8
      %s220 = scalar_lea.vmem %s3, %s219
      %s221 = smul.u32 2, %s16
      %s222 = smul.u32 2, %s16
      %p223 = scmp.lt.s32.totalorder %s222, 3
      %s224 = scalar_select %p223, %s222, 3
      %s225 = smul.addr %s224, 8
      %s226 = scalar_lea.vmem %s4, %s225
      %s227 = smul.u32 2, %s16
      %v228 = vld [vmem:[%s208] sm:$0xff]
      %v229 = vld [vmem:[%s208 + $0x8] sm:$0xff]
      %v230 = vld [vmem:[%s1] sm:$0xff]
      %v231 = vld [vmem:[%s1 + $0x8] sm:$0xff]
      %v232 = vld [vmem:[%s1 + $0x10] sm:$0xff]
      %vm233 = vcmask 64512
      %v235 = vsel %vm233, %v228, 0
      %v238 = vsel %vm233, %v229, 0
      %240 = vmatprep.subr.mxu0 0.0
      %241 = vmatpush1.msra.mxu0 0.0
      %242 = vmatprep.subr.mxu0 0.0
      %243 = vmatpush1.msra.mxu0 0.0
      %244 = vmatprep.subr.mxu0 0.0
      %245 = vmatpush1.msra.mxu0 0.0
      %246 = vmatprep.subr.mxu0 0.0
      %247 = vmatpush1.msra.mxu0 0.0
      %248 = vmatprep.subr.mxu0 0.0
      %249 = vmatpush1.msra.mxu0 0.0
      %250 = vmatprep.subr.mxu0 0.0
      %251 = vmatpush1.msra.mxu0 0.0
      %252 = vmatprep.subr.mxu0 0.0
      %253 = vmatpush1.msra.mxu0 0.0
      %254 = vmatprep.subr.mxu0 0.0
      %255 = vmatpush1.msra.mxu0 0.0
      %256 = vmatprep.subr.mxu0 0.0
      %257 = vmatpush1.msra.mxu0 0.0
      %258 = vmatprep.subr.mxu0 0.0
      %259 = vmatpush1.msra.mxu0 0.0
      %260 = vmatprep.subr.mxu0 0.0
      %261 = vmatpush1.msra.mxu0 0.0
      %262 = vmatprep.subr.mxu0 0.0
      %263 = vmatpush1.msra.mxu0 0.0
      %264 = vmatprep.subr.mxu0 0.0
      %265 = vmatpush1.msra.mxu0 0.0
      %266 = vmatprep.subr.mxu0 0.0
      %267 = vmatpush1.msra.mxu0 0.0
      %268 = vmatprep.subr.mxu0 0.0
      %269 = vmatpush1.msra.mxu0 0.0
      %v270 = vand.u32 %v231, 4294901760
      %271 = vmatprep.subr.mxu0 %v270
      %v272 = vand.u32 %v230, 4294901760
      %273 = vmatpush1.msra.mxu0 %v272
      %274 = vmatprep.subr.mxu0 0.0
      %275 = vmatpush2.msra.mxu0 0.0
      %276 = vmatprep.subr.mxu0 0.0
      %277 = vmatpush2.msra.mxu0 0.0
      %278 = vmatprep.subr.mxu0 0.0
      %279 = vmatpush2.msra.mxu0 0.0
      %280 = vmatprep.subr.mxu0 0.0
      %281 = vmatpush2.msra.mxu0 0.0
      %282 = vmatprep.subr.mxu0 0.0
      %283 = vmatpush2.msra.mxu0 0.0
      %284 = vmatprep.subr.mxu0 0.0
      %285 = vmatpush2.msra.mxu0 0.0
      %286 = vmatprep.subr.mxu0 0.0
      %287 = vmatpush2.msra.mxu0 0.0
      %288 = vmatprep.subr.mxu0 0.0
      %289 = vmatpush2.msra.mxu0 0.0
      %290 = vmatprep.subr.mxu0 0.0
      %291 = vmatpush2.msra.mxu0 0.0
      %292 = vmatprep.subr.mxu0 0.0
      %293 = vmatpush2.msra.mxu0 0.0
      %294 = vmatprep.subr.mxu0 0.0
      %295 = vmatpush2.msra.mxu0 0.0
      %296 = vmatprep.subr.mxu0 0.0
      %297 = vmatpush2.msra.mxu0 0.0
      %298 = vmatprep.subr.mxu0 0.0
      %299 = vmatpush2.msra.mxu0 0.0
      %300 = vmatprep.subr.mxu0 0.0
      %301 = vmatpush2.msra.mxu0 0.0
      %302 = vmatprep.subr.mxu0 0.0
      %303 = vmatpush2.msra.mxu0 0.0
      %304 = vmatprep.subr.mxu0 0.0
      %305 = vmatpush2.msra.mxu0 0.0
      %306 = vmatprep.mubr.f32.mxu0 0.0
      %v307 = vand.u32 %v235, 4294901760
      %v308 = vsub.f32 %v235, %v307
      %v309 = vand.u32 %v308, 4294901760
      %v310 = vsub.f32 %v308, %v309
      %v311 = vand.u32 %v310, 4294901760
      %312 = vmatmul.mubr.f32.gmra.mxu0 %v311
      %v313 = vpop.f32.mrf.mxu0
      %v314 = vadd.f32 0.0, %v313
      %v315 = vpop.f32.mrf.mxu0
      %v316 = vadd.f32 0.0, %v315
      %317 = vmatprep.mubr.f32.mxu0 0.0
      %v318 = vand.u32 %v238, 4294901760
      %v319 = vsub.f32 %v238, %v318
      %v320 = vand.u32 %v319, 4294901760
      %v321 = vsub.f32 %v319, %v320
      %v322 = vand.u32 %v321, 4294901760
      %323 = vmatmul.mubr.f32.gmra.mxu0 %v322
      %v324 = vpop.f32.mrf.mxu0
      %v325 = vadd.f32 0.0, %v324
      %v326 = vpop.f32.mrf.mxu0
      %v327 = vadd.f32 0.0, %v326
      %328 = vdwg.mxu0
      %329 = vmatprep.subr.mxu0 0.0
      %330 = vmatpush1.msra.mxu0 0.0
      %331 = vmatprep.subr.mxu0 0.0
      %332 = vmatpush1.msra.mxu0 0.0
      %333 = vmatprep.subr.mxu0 0.0
      %334 = vmatpush1.msra.mxu0 0.0
      %335 = vmatprep.subr.mxu0 0.0
      %336 = vmatpush1.msra.mxu0 0.0
      %337 = vmatprep.subr.mxu0 0.0
      %338 = vmatpush1.msra.mxu0 0.0
      %339 = vmatprep.subr.mxu0 0.0
      %340 = vmatpush1.msra.mxu0 0.0
      %341 = vmatprep.subr.mxu0 0.0
      %342 = vmatpush1.msra.mxu0 0.0
      %343 = vmatprep.subr.mxu0 0.0
      %344 = vmatpush1.msra.mxu0 0.0
      %345 = vmatprep.subr.mxu0 0.0
      %346 = vmatpush1.msra.mxu0 0.0
      %347 = vmatprep.subr.mxu0 0.0
      %348 = vmatpush1.msra.mxu0 0.0
      %349 = vmatprep.subr.mxu0 0.0
      %350 = vmatpush1.msra.mxu0 0.0
      %351 = vmatprep.subr.mxu0 0.0
      %352 = vmatpush1.msra.mxu0 0.0
      %353 = vmatprep.subr.mxu0 0.0
      %354 = vmatpush1.msra.mxu0 0.0
      %355 = vmatprep.subr.mxu0 0.0
      %356 = vmatpush1.msra.mxu0 0.0
      %357 = vmatprep.subr.mxu0 0.0
      %358 = vmatpush1.msra.mxu0 0.0
      %v359 = vand.u32 %v231, 4294901760
      %v360 = vsub.f32 %v231, %v359
      %v361 = vand.u32 %v360, 4294901760
      %v362 = vsub.f32 %v360, %v361
      %v363 = vand.u32 %v362, 4294901760
      %364 = vmatprep.subr.mxu0 %v363
      %v365 = vand.u32 %v230, 4294901760
      %v366 = vsub.f32 %v230, %v365
      %v367 = vand.u32 %v366, 4294901760
      %v368 = vsub.f32 %v366, %v367
      %v369 = vand.u32 %v368, 4294901760
      %370 = vmatpush1.msra.mxu0 %v369
      %371 = vmatprep.subr.mxu0 0.0
      %372 = vmatpush2.msra.mxu0 0.0
      %373 = vmatprep.subr.mxu0 0.0
      %374 = vmatpush2.msra.mxu0 0.0
      %375 = vmatprep.subr.mxu0 0.0
      %376 = vmatpush2.msra.mxu0 0.0
      %377 = vmatprep.subr.mxu0 0.0
      %378 = vmatpush2.msra.mxu0 0.0
      %379 = vmatprep.subr.mxu0 0.0
      %380 = vmatpush2.msra.mxu0 0.0
      %381 = vmatprep.subr.mxu0 0.0
      %382 = vmatpush2.msra.mxu0 0.0
      %383 = vmatprep.subr.mxu0 0.0
      %384 = vmatpush2.msra.mxu0 0.0
      %385 = vmatprep.subr.mxu0 0.0
      %386 = vmatpush2.msra.mxu0 0.0
      %387 = vmatprep.subr.mxu0 0.0
      %388 = vmatpush2.msra.mxu0 0.0
      %389 = vmatprep.subr.mxu0 0.0
      %390 = vmatpush2.msra.mxu0 0.0
      %391 = vmatprep.subr.mxu0 0.0
      %392 = vmatpush2.msra.mxu0 0.0
      %393 = vmatprep.subr.mxu0 0.0
      %394 = vmatpush2.msra.mxu0 0.0
      %395 = vmatprep.subr.mxu0 0.0
      %396 = vmatpush2.msra.mxu0 0.0
      %397 = vmatprep.subr.mxu0 0.0
      %398 = vmatpush2.msra.mxu0 0.0
      %399 = vmatprep.subr.mxu0 0.0
      %400 = vmatpush2.msra.mxu0 0.0
      %401 = vmatprep.subr.mxu0 0.0
      %402 = vmatpush2.msra.mxu0 0.0
      %403 = vmatprep.mubr.f32.mxu0 0.0
      %v404 = vand.u32 %v235, 4294901760
      %405 = vmatmul.mubr.f32.gmra.mxu0 %v404
      %v406 = vpop.f32.mrf.mxu0
      %v407 = vadd.f32 %v314, %v406
      %v408 = vpop.f32.mrf.mxu0
      %v409 = vadd.f32 %v316, %v408
      %410 = vmatprep.mubr.f32.mxu0 0.0
      %v411 = vand.u32 %v238, 4294901760
      %412 = vmatmul.mubr.f32.gmra.mxu0 %v411
      %v413 = vpop.f32.mrf.mxu0
      %v414 = vadd.f32 %v325, %v413
      %v415 = vpop.f32.mrf.mxu0
      %v416 = vadd.f32 %v327, %v415
      %417 = vdwg.mxu0
      %418 = vmatprep.subr.mxu0 0.0
      %419 = vmatpush1.msra.mxu0 0.0
      %420 = vmatprep.subr.mxu0 0.0
      %421 = vmatpush1.msra.mxu0 0.0
      %422 = vmatprep.subr.mxu0 0.0
      %423 = vmatpush1.msra.mxu0 0.0
      %424 = vmatprep.subr.mxu0 0.0
      %425 = vmatpush1.msra.mxu0 0.0
      %426 = vmatprep.subr.mxu0 0.0
      %427 = vmatpush1.msra.mxu0 0.0
      %428 = vmatprep.subr.mxu0 0.0
      %429 = vmatpush1.msra.mxu0 0.0
      %430 = vmatprep.subr.mxu0 0.0
      %431 = vmatpush1.msra.mxu0 0.0
      %432 = vmatprep.subr.mxu0 0.0
      %433 = vmatpush1.msra.mxu0 0.0
      %434 = vmatprep.subr.mxu0 0.0
      %435 = vmatpush1.msra.mxu0 0.0
      %436 = vmatprep.subr.mxu0 0.0
      %437 = vmatpush1.msra.mxu0 0.0
      %438 = vmatprep.subr.mxu0 0.0
      %439 = vmatpush1.msra.mxu0 0.0
      %440 = vmatprep.subr.mxu0 0.0
      %441 = vmatpush1.msra.mxu0 0.0
      %442 = vmatprep.subr.mxu0 0.0
      %443 = vmatpush1.msra.mxu0 0.0
      %444 = vmatprep.subr.mxu0 0.0
      %445 = vmatpush1.msra.mxu0 0.0
      %446 = vmatprep.subr.mxu0 0.0
      %447 = vmatpush1.msra.mxu0 0.0
      %v448 = vand.u32 %v231, 4294901760
      %v449 = vsub.f32 %v231, %v448
      %450 = vmatprep.subr.mxu0 %v449
      %v451 = vand.u32 %v230, 4294901760
      %v452 = vsub.f32 %v230, %v451
      %453 = vmatpush1.msra.mxu0 %v452
      %454 = vmatprep.subr.mxu0 0.0
      %455 = vmatpush2.msra.mxu0 0.0
      %456 = vmatprep.subr.mxu0 0.0
      %457 = vmatpush2.msra.mxu0 0.0
      %458 = vmatprep.subr.mxu0 0.0
      %459 = vmatpush2.msra.mxu0 0.0
      %460 = vmatprep.subr.mxu0 0.0
      %461 = vmatpush2.msra.mxu0 0.0
      %462 = vmatprep.subr.mxu0 0.0
      %463 = vmatpush2.msra.mxu0 0.0
      %464 = vmatprep.subr.mxu0 0.0
      %465 = vmatpush2.msra.mxu0 0.0
      %466 = vmatprep.subr.mxu0 0.0
      %467 = vmatpush2.msra.mxu0 0.0
      %468 = vmatprep.subr.mxu0 0.0
      %469 = vmatpush2.msra.mxu0 0.0
      %470 = vmatprep.subr.mxu0 0.0
      %471 = vmatpush2.msra.mxu0 0.0
      %472 = vmatprep.subr.mxu0 0.0
      %473 = vmatpush2.msra.mxu0 0.0
      %474 = vmatprep.subr.mxu0 0.0
      %475 = vmatpush2.msra.mxu0 0.0
      %476 = vmatprep.subr.mxu0 0.0
      %477 = vmatpush2.msra.mxu0 0.0
      %478 = vmatprep.subr.mxu0 0.0
      %479 = vmatpush2.msra.mxu0 0.0
      %480 = vmatprep.subr.mxu0 0.0
      %481 = vmatpush2.msra.mxu0 0.0
      %482 = vmatprep.subr.mxu0 0.0
      %483 = vmatpush2.msra.mxu0 0.0
      %484 = vmatprep.subr.mxu0 0.0
      %485 = vmatpush2.msra.mxu0 0.0
      %486 = vmatprep.mubr.f32.mxu0 0.0
      %v487 = vand.u32 %v235, 4294901760
      %v488 = vsub.f32 %v235, %v487
      %489 = vmatmul.mubr.f32.gmra.mxu0 %v488
      %v490 = vpop.f32.mrf.mxu0
      %v491 = vadd.f32 %v407, %v490
      %v492 = vpop.f32.mrf.mxu0
      %v493 = vadd.f32 %v409, %v492
      %494 = vmatprep.mubr.f32.mxu0 0.0
      %v495 = vand.u32 %v238, 4294901760
      %v496 = vsub.f32 %v238, %v495
      %497 = vmatmul.mubr.f32.gmra.mxu0 %v496
      %v498 = vpop.f32.mrf.mxu0
      %v499 = vadd.f32 %v414, %v498
      %v500 = vpop.f32.mrf.mxu0
      %v501 = vadd.f32 %v416, %v500
      %502 = vdwg.mxu0
      %503 = vmatprep.subr.mxu0 0.0
      %504 = vmatpush1.msra.mxu0 0.0
      %505 = vmatprep.subr.mxu0 0.0
      %506 = vmatpush1.msra.mxu0 0.0
      %507 = vmatprep.subr.mxu0 0.0
      %508 = vmatpush1.msra.mxu0 0.0
      %509 = vmatprep.subr.mxu0 0.0
      %510 = vmatpush1.msra.mxu0 0.0
      %511 = vmatprep.subr.mxu0 0.0
      %512 = vmatpush1.msra.mxu0 0.0
      %513 = vmatprep.subr.mxu0 0.0
      %514 = vmatpush1.msra.mxu0 0.0
      %515 = vmatprep.subr.mxu0 0.0
      %516 = vmatpush1.msra.mxu0 0.0
      %517 = vmatprep.subr.mxu0 0.0
      %518 = vmatpush1.msra.mxu0 0.0
      %519 = vmatprep.subr.mxu0 0.0
      %520 = vmatpush1.msra.mxu0 0.0
      %521 = vmatprep.subr.mxu0 0.0
      %522 = vmatpush1.msra.mxu0 0.0
      %523 = vmatprep.subr.mxu0 0.0
      %524 = vmatpush1.msra.mxu0 0.0
      %525 = vmatprep.subr.mxu0 0.0
      %526 = vmatpush1.msra.mxu0 0.0
      %527 = vmatprep.subr.mxu0 0.0
      %528 = vmatpush1.msra.mxu0 0.0
      %529 = vmatprep.subr.mxu0 0.0
      %530 = vmatpush1.msra.mxu0 0.0
      %531 = vmatprep.subr.mxu0 0.0
      %532 = vmatpush1.msra.mxu0 0.0
      %v533 = vand.u32 %v231, 4294901760
      %534 = vmatprep.subr.mxu0 %v533
      %v535 = vand.u32 %v230, 4294901760
      %536 = vmatpush1.msra.mxu0 %v535
      %537 = vmatprep.subr.mxu0 0.0
      %538 = vmatpush2.msra.mxu0 0.0
      %539 = vmatprep.subr.mxu0 0.0
      %540 = vmatpush2.msra.mxu0 0.0
      %541 = vmatprep.subr.mxu0 0.0
      %542 = vmatpush2.msra.mxu0 0.0
      %543 = vmatprep.subr.mxu0 0.0
      %544 = vmatpush2.msra.mxu0 0.0
      %545 = vmatprep.subr.mxu0 0.0
      %546 = vmatpush2.msra.mxu0 0.0
      %547 = vmatprep.subr.mxu0 0.0
      %548 = vmatpush2.msra.mxu0 0.0
      %549 = vmatprep.subr.mxu0 0.0
      %550 = vmatpush2.msra.mxu0 0.0
      %551 = vmatprep.subr.mxu0 0.0
      %552 = vmatpush2.msra.mxu0 0.0
      %553 = vmatprep.subr.mxu0 0.0
      %554 = vmatpush2.msra.mxu0 0.0
      %555 = vmatprep.subr.mxu0 0.0
      %556 = vmatpush2.msra.mxu0 0.0
      %557 = vmatprep.subr.mxu0 0.0
      %558 = vmatpush2.msra.mxu0 0.0
      %559 = vmatprep.subr.mxu0 0.0
      %560 = vmatpush2.msra.mxu0 0.0
      %561 = vmatprep.subr.mxu0 0.0
      %562 = vmatpush2.msra.mxu0 0.0
      %563 = vmatprep.subr.mxu0 0.0
      %564 = vmatpush2.msra.mxu0 0.0
      %565 = vmatprep.subr.mxu0 0.0
      %566 = vmatpush2.msra.mxu0 0.0
      %567 = vmatprep.subr.mxu0 0.0
      %568 = vmatpush2.msra.mxu0 0.0
      %569 = vmatprep.mubr.f32.mxu0 0.0
      %v570 = vand.u32 %v235, 4294901760
      %v571 = vsub.f32 %v235, %v570
      %v572 = vand.u32 %v571, 4294901760
      %573 = vmatmul.mubr.f32.gmra.mxu0 %v572
      %v574 = vpop.f32.mrf.mxu0
      %v575 = vadd.f32 %v491, %v574
      %v576 = vpop.f32.mrf.mxu0
      %v577 = vadd.f32 %v493, %v576
      %578 = vmatprep.mubr.f32.mxu0 0.0
      %v579 = vand.u32 %v238, 4294901760
      %v580 = vsub.f32 %v238, %v579
      %v581 = vand.u32 %v580, 4294901760
      %582 = vmatmul.mubr.f32.gmra.mxu0 %v581
      %v583 = vpop.f32.mrf.mxu0
      %v584 = vadd.f32 %v499, %v583
      %v585 = vpop.f32.mrf.mxu0
      %v586 = vadd.f32 %v501, %v585
      %587 = vdwg.mxu0
      %588 = vmatprep.subr.mxu0 0.0
      %589 = vmatpush1.msra.mxu0 0.0
      %590 = vmatprep.subr.mxu0 0.0
      %591 = vmatpush1.msra.mxu0 0.0
      %592 = vmatprep.subr.mxu0 0.0
      %593 = vmatpush1.msra.mxu0 0.0
      %594 = vmatprep.subr.mxu0 0.0
      %595 = vmatpush1.msra.mxu0 0.0
      %596 = vmatprep.subr.mxu0 0.0
      %597 = vmatpush1.msra.mxu0 0.0
      %598 = vmatprep.subr.mxu0 0.0
      %599 = vmatpush1.msra.mxu0 0.0
      %600 = vmatprep.subr.mxu0 0.0
      %601 = vmatpush1.msra.mxu0 0.0
      %602 = vmatprep.subr.mxu0 0.0
      %603 = vmatpush1.msra.mxu0 0.0
      %604 = vmatprep.subr.mxu0 0.0
      %605 = vmatpush1.msra.mxu0 0.0
      %606 = vmatprep.subr.mxu0 0.0
      %607 = vmatpush1.msra.mxu0 0.0
      %608 = vmatprep.subr.mxu0 0.0
      %609 = vmatpush1.msra.mxu0 0.0
      %610 = vmatprep.subr.mxu0 0.0
      %611 = vmatpush1.msra.mxu0 0.0
      %612 = vmatprep.subr.mxu0 0.0
      %613 = vmatpush1.msra.mxu0 0.0
      %614 = vmatprep.subr.mxu0 0.0
      %615 = vmatpush1.msra.mxu0 0.0
      %616 = vmatprep.subr.mxu0 0.0
      %617 = vmatpush1.msra.mxu0 0.0
      %v618 = vand.u32 %v231, 4294901760
      %v619 = vsub.f32 %v231, %v618
      %v620 = vand.u32 %v619, 4294901760
      %621 = vmatprep.subr.mxu0 %v620
      %v622 = vand.u32 %v230, 4294901760
      %v623 = vsub.f32 %v230, %v622
      %v624 = vand.u32 %v623, 4294901760
      %625 = vmatpush1.msra.mxu0 %v624
      %626 = vmatprep.subr.mxu0 0.0
      %627 = vmatpush2.msra.mxu0 0.0
      %628 = vmatprep.subr.mxu0 0.0
      %629 = vmatpush2.msra.mxu0 0.0
      %630 = vmatprep.subr.mxu0 0.0
      %631 = vmatpush2.msra.mxu0 0.0
      %632 = vmatprep.subr.mxu0 0.0
      %633 = vmatpush2.msra.mxu0 0.0
      %634 = vmatprep.subr.mxu0 0.0
      %635 = vmatpush2.msra.mxu0 0.0
      %636 = vmatprep.subr.mxu0 0.0
      %637 = vmatpush2.msra.mxu0 0.0
      %638 = vmatprep.subr.mxu0 0.0
      %639 = vmatpush2.msra.mxu0 0.0
      %640 = vmatprep.subr.mxu0 0.0
      %641 = vmatpush2.msra.mxu0 0.0
      %642 = vmatprep.subr.mxu0 0.0
      %643 = vmatpush2.msra.mxu0 0.0
      %644 = vmatprep.subr.mxu0 0.0
      %645 = vmatpush2.msra.mxu0 0.0
      %646 = vmatprep.subr.mxu0 0.0
      %647 = vmatpush2.msra.mxu0 0.0
      %648 = vmatprep.subr.mxu0 0.0
      %649 = vmatpush2.msra.mxu0 0.0
      %650 = vmatprep.subr.mxu0 0.0
      %651 = vmatpush2.msra.mxu0 0.0
      %652 = vmatprep.subr.mxu0 0.0
      %653 = vmatpush2.msra.mxu0 0.0
      %654 = vmatprep.subr.mxu0 0.0
      %655 = vmatpush2.msra.mxu0 0.0
      %656 = vmatprep.subr.mxu0 0.0
      %657 = vmatpush2.msra.mxu0 0.0
      %658 = vmatprep.mubr.f32.mxu0 0.0
      %v659 = vand.u32 %v235, 4294901760
      %660 = vmatmul.mubr.f32.gmra.mxu0 %v659
      %v661 = vpop.f32.mrf.mxu0
      %v662 = vadd.f32 %v575, %v661
      %v663 = vpop.f32.mrf.mxu0
      %v664 = vadd.f32 %v577, %v663
      %665 = vmatprep.mubr.f32.mxu0 0.0
      %v666 = vand.u32 %v238, 4294901760
      %667 = vmatmul.mubr.f32.gmra.mxu0 %v666
      %v668 = vpop.f32.mrf.mxu0
      %v669 = vadd.f32 %v584, %v668
      %v670 = vpop.f32.mrf.mxu0
      %v671 = vadd.f32 %v586, %v670
      %672 = vdwg.mxu0
      %673 = vmatprep.subr.mxu0 0.0
      %674 = vmatpush1.msra.mxu0 0.0
      %675 = vmatprep.subr.mxu0 0.0
      %676 = vmatpush1.msra.mxu0 0.0
      %677 = vmatprep.subr.mxu0 0.0
      %678 = vmatpush1.msra.mxu0 0.0
      %679 = vmatprep.subr.mxu0 0.0
      %680 = vmatpush1.msra.mxu0 0.0
      %681 = vmatprep.subr.mxu0 0.0
      %682 = vmatpush1.msra.mxu0 0.0
      %683 = vmatprep.subr.mxu0 0.0
      %684 = vmatpush1.msra.mxu0 0.0
      %685 = vmatprep.subr.mxu0 0.0
      %686 = vmatpush1.msra.mxu0 0.0
      %687 = vmatprep.subr.mxu0 0.0
      %688 = vmatpush1.msra.mxu0 0.0
      %689 = vmatprep.subr.mxu0 0.0
      %690 = vmatpush1.msra.mxu0 0.0
      %691 = vmatprep.subr.mxu0 0.0
      %692 = vmatpush1.msra.mxu0 0.0
      %693 = vmatprep.subr.mxu0 0.0
      %694 = vmatpush1.msra.mxu0 0.0
      %695 = vmatprep.subr.mxu0 0.0
      %696 = vmatpush1.msra.mxu0 0.0
      %697 = vmatprep.subr.mxu0 0.0
      %698 = vmatpush1.msra.mxu0 0.0
      %699 = vmatprep.subr.mxu0 0.0
      %700 = vmatpush1.msra.mxu0 0.0
      %701 = vmatprep.subr.mxu0 0.0
      %702 = vmatpush1.msra.mxu0 0.0
      %v703 = vand.u32 %v231, 4294901760
      %704 = vmatprep.subr.mxu0 %v703
      %v705 = vand.u32 %v230, 4294901760
      %706 = vmatpush1.msra.mxu0 %v705
      %707 = vmatprep.subr.mxu0 0.0
      %708 = vmatpush2.msra.mxu0 0.0
      %709 = vmatprep.subr.mxu0 0.0
      %710 = vmatpush2.msra.mxu0 0.0
      %711 = vmatprep.subr.mxu0 0.0
      %712 = vmatpush2.msra.mxu0 0.0
      %713 = vmatprep.subr.mxu0 0.0
      %714 = vmatpush2.msra.mxu0 0.0
      %715 = vmatprep.subr.mxu0 0.0
      %716 = vmatpush2.msra.mxu0 0.0
      %717 = vmatprep.subr.mxu0 0.0
      %718 = vmatpush2.msra.mxu0 0.0
      %719 = vmatprep.subr.mxu0 0.0
      %720 = vmatpush2.msra.mxu0 0.0
      %721 = vmatprep.subr.mxu0 0.0
      %722 = vmatpush2.msra.mxu0 0.0
      %723 = vmatprep.subr.mxu0 0.0
      %724 = vmatpush2.msra.mxu0 0.0
      %725 = vmatprep.subr.mxu0 0.0
      %726 = vmatpush2.msra.mxu0 0.0
      %727 = vmatprep.subr.mxu0 0.0
      %728 = vmatpush2.msra.mxu0 0.0
      %729 = vmatprep.subr.mxu0 0.0
      %730 = vmatpush2.msra.mxu0 0.0
      %731 = vmatprep.subr.mxu0 0.0
      %732 = vmatpush2.msra.mxu0 0.0
      %733 = vmatprep.subr.mxu0 0.0
      %734 = vmatpush2.msra.mxu0 0.0
      %735 = vmatprep.subr.mxu0 0.0
      %736 = vmatpush2.msra.mxu0 0.0
      %737 = vmatprep.subr.mxu0 0.0
      %738 = vmatpush2.msra.mxu0 0.0
      %739 = vmatprep.mubr.f32.mxu0 0.0
      %v740 = vand.u32 %v235, 4294901760
      %741 = vmatmul.mubr.f32.gmra.mxu0 %v740
      %v742 = vpop.f32.mrf.mxu0
      %v743 = vadd.f32 %v662, %v742
      %v744 = vpop.f32.mrf.mxu0
      %v745 = vadd.f32 %v664, %v744
      %746 = vmatprep.mubr.f32.mxu0 0.0
      %v747 = vand.u32 %v238, 4294901760
      %748 = vmatmul.mubr.f32.gmra.mxu0 %v747
      %v749 = vpop.f32.mrf.mxu0
      %v750 = vadd.f32 %v669, %v749
      %v751 = vpop.f32.mrf.mxu0
      %v752 = vadd.f32 %v671, %v751
      %753 = vdwg.mxu0
      %754 = vmatprep.subr.mxu0 0.0
      %755 = vmatpush1.msra.mxu0 0.0
      %756 = vmatprep.subr.mxu0 0.0
      %757 = vmatpush1.msra.mxu0 0.0
      %758 = vmatprep.subr.mxu0 0.0
      %759 = vmatpush1.msra.mxu0 0.0
      %760 = vmatprep.subr.mxu0 0.0
      %761 = vmatpush1.msra.mxu0 0.0
      %762 = vmatprep.subr.mxu0 0.0
      %763 = vmatpush1.msra.mxu0 0.0
      %764 = vmatprep.subr.mxu0 0.0
      %765 = vmatpush1.msra.mxu0 0.0
      %766 = vmatprep.subr.mxu0 0.0
      %767 = vmatpush1.msra.mxu0 0.0
      %768 = vmatprep.subr.mxu0 0.0
      %769 = vmatpush1.msra.mxu0 0.0
      %770 = vmatprep.subr.mxu0 0.0
      %771 = vmatpush1.msra.mxu0 0.0
      %772 = vmatprep.subr.mxu0 0.0
      %773 = vmatpush1.msra.mxu0 0.0
      %774 = vmatprep.subr.mxu0 0.0
      %775 = vmatpush1.msra.mxu0 0.0
      %776 = vmatprep.subr.mxu0 0.0
      %777 = vmatpush1.msra.mxu0 0.0
      %778 = vmatprep.subr.mxu0 0.0
      %779 = vmatpush1.msra.mxu0 0.0
      %780 = vmatprep.subr.mxu0 0.0
      %781 = vmatpush1.msra.mxu0 0.0
      %782 = vmatprep.subr.mxu0 0.0
      %783 = vmatpush1.msra.mxu0 0.0
      %784 = vmatprep.subr.mxu0 0.0
      %v785 = vand.u32 %v232, 4294901760
      %786 = vmatpush1.msra.mxu0 %v785
      %787 = vmatprep.subr.mxu0 0.0
      %788 = vmatpush2.msra.mxu0 0.0
      %789 = vmatprep.subr.mxu0 0.0
      %790 = vmatpush2.msra.mxu0 0.0
      %791 = vmatprep.subr.mxu0 0.0
      %792 = vmatpush2.msra.mxu0 0.0
      %793 = vmatprep.subr.mxu0 0.0
      %794 = vmatpush2.msra.mxu0 0.0
      %795 = vmatprep.subr.mxu0 0.0
      %796 = vmatpush2.msra.mxu0 0.0
      %797 = vmatprep.subr.mxu0 0.0
      %798 = vmatpush2.msra.mxu0 0.0
      %799 = vmatprep.subr.mxu0 0.0
      %800 = vmatpush2.msra.mxu0 0.0
      %801 = vmatprep.subr.mxu0 0.0
      %802 = vmatpush2.msra.mxu0 0.0
      %803 = vmatprep.subr.mxu0 0.0
      %804 = vmatpush2.msra.mxu0 0.0
      %805 = vmatprep.subr.mxu0 0.0
      %806 = vmatpush2.msra.mxu0 0.0
      %807 = vmatprep.subr.mxu0 0.0
      %808 = vmatpush2.msra.mxu0 0.0
      %809 = vmatprep.subr.mxu0 0.0
      %810 = vmatpush2.msra.mxu0 0.0
      %811 = vmatprep.subr.mxu0 0.0
      %812 = vmatpush2.msra.mxu0 0.0
      %813 = vmatprep.subr.mxu0 0.0
      %814 = vmatpush2.msra.mxu0 0.0
      %815 = vmatprep.subr.mxu0 0.0
      %816 = vmatpush2.msra.mxu0 0.0
      %817 = vmatprep.subr.mxu0 0.0
      %818 = vmatpush2.msra.mxu0 0.0
      %819 = vmatprep.mubr.f32.mxu0 0.0
      %v820 = vand.u32 %v235, 4294901760
      %v821 = vsub.f32 %v235, %v820
      %v822 = vand.u32 %v821, 4294901760
      %v823 = vsub.f32 %v821, %v822
      %v824 = vand.u32 %v823, 4294901760
      %825 = vmatmul.mubr.f32.gmra.mxu0 %v824
      %v826 = vpop.f32.mrf.mxu0
      %v827 = vadd.f32 0.0, %v826
      %v828 = vpop.f32.mrf.mxu0
      %829 = vmatprep.mubr.f32.mxu0 0.0
      %v830 = vand.u32 %v238, 4294901760
      %v831 = vsub.f32 %v238, %v830
      %v832 = vand.u32 %v831, 4294901760
      %v833 = vsub.f32 %v831, %v832
      %v834 = vand.u32 %v833, 4294901760
      %835 = vmatmul.mubr.f32.gmra.mxu0 %v834
      %v836 = vpop.f32.mrf.mxu0
      %v837 = vadd.f32 0.0, %v836
      %v838 = vpop.f32.mrf.mxu0
      %839 = vdwg.mxu0
      %840 = vmatprep.subr.mxu0 0.0
      %841 = vmatpush1.msra.mxu0 0.0
      %842 = vmatprep.subr.mxu0 0.0
      %843 = vmatpush1.msra.mxu0 0.0
      %844 = vmatprep.subr.mxu0 0.0
      %845 = vmatpush1.msra.mxu0 0.0
      %846 = vmatprep.subr.mxu0 0.0
      %847 = vmatpush1.msra.mxu0 0.0
      %848 = vmatprep.subr.mxu0 0.0
      %849 = vmatpush1.msra.mxu0 0.0
      %850 = vmatprep.subr.mxu0 0.0
      %851 = vmatpush1.msra.mxu0 0.0
      %852 = vmatprep.subr.mxu0 0.0
      %853 = vmatpush1.msra.mxu0 0.0
      %854 = vmatprep.subr.mxu0 0.0
      %855 = vmatpush1.msra.mxu0 0.0
      %856 = vmatprep.subr.mxu0 0.0
      %857 = vmatpush1.msra.mxu0 0.0
      %858 = vmatprep.subr.mxu0 0.0
      %859 = vmatpush1.msra.mxu0 0.0
      %860 = vmatprep.subr.mxu0 0.0
      %861 = vmatpush1.msra.mxu0 0.0
      %862 = vmatprep.subr.mxu0 0.0
      %863 = vmatpush1.msra.mxu0 0.0
      %864 = vmatprep.subr.mxu0 0.0
      %865 = vmatpush1.msra.mxu0 0.0
      %866 = vmatprep.subr.mxu0 0.0
      %867 = vmatpush1.msra.mxu0 0.0
      %868 = vmatprep.subr.mxu0 0.0
      %869 = vmatpush1.msra.mxu0 0.0
      %870 = vmatprep.subr.mxu0 0.0
      %v871 = vand.u32 %v232, 4294901760
      %v872 = vsub.f32 %v232, %v871
      %v873 = vand.u32 %v872, 4294901760
      %v874 = vsub.f32 %v872, %v873
      %v875 = vand.u32 %v874, 4294901760
      %876 = vmatpush1.msra.mxu0 %v875
      %877 = vmatprep.subr.mxu0 0.0
      %878 = vmatpush2.msra.mxu0 0.0
      %879 = vmatprep.subr.mxu0 0.0
      %880 = vmatpush2.msra.mxu0 0.0
      %881 = vmatprep.subr.mxu0 0.0
      %882 = vmatpush2.msra.mxu0 0.0
      %883 = vmatprep.subr.mxu0 0.0
      %884 = vmatpush2.msra.mxu0 0.0
      %885 = vmatprep.subr.mxu0 0.0
      %886 = vmatpush2.msra.mxu0 0.0
      %887 = vmatprep.subr.mxu0 0.0
      %888 = vmatpush2.msra.mxu0 0.0
      %889 = vmatprep.subr.mxu0 0.0
      %890 = vmatpush2.msra.mxu0 0.0
      %891 = vmatprep.subr.mxu0 0.0
      %892 = vmatpush2.msra.mxu0 0.0
      %893 = vmatprep.subr.mxu0 0.0
      %894 = vmatpush2.msra.mxu0 0.0
      %895 = vmatprep.subr.mxu0 0.0
      %896 = vmatpush2.msra.mxu0 0.0
      %897 = vmatprep.subr.mxu0 0.0
      %898 = vmatpush2.msra.mxu0 0.0
      %899 = vmatprep.subr.mxu0 0.0
      %900 = vmatpush2.msra.mxu0 0.0
      %901 = vmatprep.subr.mxu0 0.0
      %902 = vmatpush2.msra.mxu0 0.0
      %903 = vmatprep.subr.mxu0 0.0
      %904 = vmatpush2.msra.mxu0 0.0
      %905 = vmatprep.subr.mxu0 0.0
      %906 = vmatpush2.msra.mxu0 0.0
      %907 = vmatprep.subr.mxu0 0.0
      %908 = vmatpush2.msra.mxu0 0.0
      %909 = vmatprep.mubr.f32.mxu0 0.0
      %v910 = vand.u32 %v235, 4294901760
      %911 = vmatmul.mubr.f32.gmra.mxu0 %v910
      %v912 = vpop.f32.mrf.mxu0
      %v913 = vadd.f32 %v827, %v912
      %v914 = vpop.f32.mrf.mxu0
      %915 = vmatprep.mubr.f32.mxu0 0.0
      %v916 = vand.u32 %v238, 4294901760
      %917 = vmatmul.mubr.f32.gmra.mxu0 %v916
      %v918 = vpop.f32.mrf.mxu0
      %v919 = vadd.f32 %v837, %v918
      %v920 = vpop.f32.mrf.mxu0
      %921 = vdwg.mxu0
      %922 = vmatprep.subr.mxu0 0.0
      %923 = vmatpush1.msra.mxu0 0.0
      %924 = vmatprep.subr.mxu0 0.0
      %925 = vmatpush1.msra.mxu0 0.0
      %926 = vmatprep.subr.mxu0 0.0
      %927 = vmatpush1.msra.mxu0 0.0
      %928 = vmatprep.subr.mxu0 0.0
      %929 = vmatpush1.msra.mxu0 0.0
      %930 = vmatprep.subr.mxu0 0.0
      %931 = vmatpush1.msra.mxu0 0.0
      %932 = vmatprep.subr.mxu0 0.0
      %933 = vmatpush1.msra.mxu0 0.0
      %934 = vmatprep.subr.mxu0 0.0
      %935 = vmatpush1.msra.mxu0 0.0
      %936 = vmatprep.subr.mxu0 0.0
      %937 = vmatpush1.msra.mxu0 0.0
      %938 = vmatprep.subr.mxu0 0.0
      %939 = vmatpush1.msra.mxu0 0.0
      %940 = vmatprep.subr.mxu0 0.0
      %941 = vmatpush1.msra.mxu0 0.0
      %942 = vmatprep.subr.mxu0 0.0
      %943 = vmatpush1.msra.mxu0 0.0
      %944 = vmatprep.subr.mxu0 0.0
      %945 = vmatpush1.msra.mxu0 0.0
      %946 = vmatprep.subr.mxu0 0.0
      %947 = vmatpush1.msra.mxu0 0.0
      %948 = vmatprep.subr.mxu0 0.0
      %949 = vmatpush1.msra.mxu0 0.0
      %950 = vmatprep.subr.mxu0 0.0
      %951 = vmatpush1.msra.mxu0 0.0
      %952 = vmatprep.subr.mxu0 0.0
      %v953 = vand.u32 %v232, 4294901760
      %v954 = vsub.f32 %v232, %v953
      %955 = vmatpush1.msra.mxu0 %v954
      %956 = vmatprep.subr.mxu0 0.0
      %957 = vmatpush2.msra.mxu0 0.0
      %958 = vmatprep.subr.mxu0 0.0
      %959 = vmatpush2.msra.mxu0 0.0
      %960 = vmatprep.subr.mxu0 0.0
      %961 = vmatpush2.msra.mxu0 0.0
      %962 = vmatprep.subr.mxu0 0.0
      %963 = vmatpush2.msra.mxu0 0.0
      %964 = vmatprep.subr.mxu0 0.0
      %965 = vmatpush2.msra.mxu0 0.0
      %966 = vmatprep.subr.mxu0 0.0
      %967 = vmatpush2.msra.mxu0 0.0
      %968 = vmatprep.subr.mxu0 0.0
      %969 = vmatpush2.msra.mxu0 0.0
      %970 = vmatprep.subr.mxu0 0.0
      %971 = vmatpush2.msra.mxu0 0.0
      %972 = vmatprep.subr.mxu0 0.0
      %973 = vmatpush2.msra.mxu0 0.0
      %974 = vmatprep.subr.mxu0 0.0
      %975 = vmatpush2.msra.mxu0 0.0
      %976 = vmatprep.subr.mxu0 0.0
      %977 = vmatpush2.msra.mxu0 0.0
      %978 = vmatprep.subr.mxu0 0.0
      %979 = vmatpush2.msra.mxu0 0.0
      %980 = vmatprep.subr.mxu0 0.0
      %981 = vmatpush2.msra.mxu0 0.0
      %982 = vmatprep.subr.mxu0 0.0
      %983 = vmatpush2.msra.mxu0 0.0
      %984 = vmatprep.subr.mxu0 0.0
      %985 = vmatpush2.msra.mxu0 0.0
      %986 = vmatprep.subr.mxu0 0.0
      %987 = vmatpush2.msra.mxu0 0.0
      %988 = vmatprep.mubr.f32.mxu0 0.0
      %v989 = vand.u32 %v235, 4294901760
      %v990 = vsub.f32 %v235, %v989
      %991 = vmatmul.mubr.f32.gmra.mxu0 %v990
      %v992 = vpop.f32.mrf.mxu0
      %v993 = vadd.f32 %v913, %v992
      %v994 = vpop.f32.mrf.mxu0
      %995 = vmatprep.mubr.f32.mxu0 0.0
      %v996 = vand.u32 %v238, 4294901760
      %v997 = vsub.f32 %v238, %v996
      %998 = vmatmul.mubr.f32.gmra.mxu0 %v997
      %v999 = vpop.f32.mrf.mxu0
      %v1000 = vadd.f32 %v919, %v999
      %v1001 = vpop.f32.mrf.mxu0
      %1002 = vdwg.mxu0
      %1003 = vmatprep.subr.mxu0 0.0
      %1004 = vmatpush1.msra.mxu0 0.0
      %1005 = vmatprep.subr.mxu0 0.0
      %1006 = vmatpush1.msra.mxu0 0.0
      %1007 = vmatprep.subr.mxu0 0.0
      %1008 = vmatpush1.msra.mxu0 0.0
      %1009 = vmatprep.subr.mxu0 0.0
      %1010 = vmatpush1.msra.mxu0 0.0
      %1011 = vmatprep.subr.mxu0 0.0
      %1012 = vmatpush1.msra.mxu0 0.0
      %1013 = vmatprep.subr.mxu0 0.0
      %1014 = vmatpush1.msra.mxu0 0.0
      %1015 = vmatprep.subr.mxu0 0.0
      %1016 = vmatpush1.msra.mxu0 0.0
      %1017 = vmatprep.subr.mxu0 0.0
      %1018 = vmatpush1.msra.mxu0 0.0
      %1019 = vmatprep.subr.mxu0 0.0
      %1020 = vmatpush1.msra.mxu0 0.0
      %1021 = vmatprep.subr.mxu0 0.0
      %1022 = vmatpush1.msra.mxu0 0.0
      %1023 = vmatprep.subr.mxu0 0.0
      %1024 = vmatpush1.msra.mxu0 0.0
      %1025 = vmatprep.subr.mxu0 0.0
      %1026 = vmatpush1.msra.mxu0 0.0
      %1027 = vmatprep.subr.mxu0 0.0
      %1028 = vmatpush1.msra.mxu0 0.0
      %1029 = vmatprep.subr.mxu0 0.0
      %1030 = vmatpush1.msra.mxu0 0.0
      %1031 = vmatprep.subr.mxu0 0.0
      %1032 = vmatpush1.msra.mxu0 0.0
      %1033 = vmatprep.subr.mxu0 0.0
      %v1034 = vand.u32 %v232, 4294901760
      %1035 = vmatpush1.msra.mxu0 %v1034
      %1036 = vmatprep.subr.mxu0 0.0
      %1037 = vmatpush2.msra.mxu0 0.0
      %1038 = vmatprep.subr.mxu0 0.0
      %1039 = vmatpush2.msra.mxu0 0.0
      %1040 = vmatprep.subr.mxu0 0.0
      %1041 = vmatpush2.msra.mxu0 0.0
      %1042 = vmatprep.subr.mxu0 0.0
      %1043 = vmatpush2.msra.mxu0 0.0
      %1044 = vmatprep.subr.mxu0 0.0
      %1045 = vmatpush2.msra.mxu0 0.0
      %1046 = vmatprep.subr.mxu0 0.0
      %1047 = vmatpush2.msra.mxu0 0.0
      %1048 = vmatprep.subr.mxu0 0.0
      %1049 = vmatpush2.msra.mxu0 0.0
      %1050 = vmatprep.subr.mxu0 0.0
      %1051 = vmatpush2.msra.mxu0 0.0
      %1052 = vmatprep.subr.mxu0 0.0
      %1053 = vmatpush2.msra.mxu0 0.0
      %1054 = vmatprep.subr.mxu0 0.0
      %1055 = vmatpush2.msra.mxu0 0.0
      %1056 = vmatprep.subr.mxu0 0.0
      %1057 = vmatpush2.msra.mxu0 0.0
      %1058 = vmatprep.subr.mxu0 0.0
      %1059 = vmatpush2.msra.mxu0 0.0
      %1060 = vmatprep.subr.mxu0 0.0
      %1061 = vmatpush2.msra.mxu0 0.0
      %1062 = vmatprep.subr.mxu0 0.0
      %1063 = vmatpush2.msra.mxu0 0.0
      %1064 = vmatprep.subr.mxu0 0.0
      %1065 = vmatpush2.msra.mxu0 0.0
      %1066 = vmatprep.subr.mxu0 0.0
      %1067 = vmatpush2.msra.mxu0 0.0
      %1068 = vmatprep.mubr.f32.mxu0 0.0
      %v1069 = vand.u32 %v235, 4294901760
      %v1070 = vsub.f32 %v235, %v1069
      %v1071 = vand.u32 %v1070, 4294901760
      %1072 = vmatmul.mubr.f32.gmra.mxu0 %v1071
      %v1073 = vpop.f32.mrf.mxu0
      %v1074 = vadd.f32 %v993, %v1073
      %v1075 = vpop.f32.mrf.mxu0
      %1076 = vmatprep.mubr.f32.mxu0 0.0
      %v1077 = vand.u32 %v238, 4294901760
      %v1078 = vsub.f32 %v238, %v1077
      %v1079 = vand.u32 %v1078, 4294901760
      %1080 = vmatmul.mubr.f32.gmra.mxu0 %v1079
      %v1081 = vpop.f32.mrf.mxu0
      %v1082 = vadd.f32 %v1000, %v1081
      %v1083 = vpop.f32.mrf.mxu0
      %1084 = vdwg.mxu0
      %1085 = vmatprep.subr.mxu0 0.0
      %1086 = vmatpush1.msra.mxu0 0.0
      %1087 = vmatprep.subr.mxu0 0.0
      %1088 = vmatpush1.msra.mxu0 0.0
      %1089 = vmatprep.subr.mxu0 0.0
      %1090 = vmatpush1.msra.mxu0 0.0
      %1091 = vmatprep.subr.mxu0 0.0
      %1092 = vmatpush1.msra.mxu0 0.0
      %1093 = vmatprep.subr.mxu0 0.0
      %1094 = vmatpush1.msra.mxu0 0.0
      %1095 = vmatprep.subr.mxu0 0.0
      %1096 = vmatpush1.msra.mxu0 0.0
      %1097 = vmatprep.subr.mxu0 0.0
      %1098 = vmatpush1.msra.mxu0 0.0
      %1099 = vmatprep.subr.mxu0 0.0
      %1100 = vmatpush1.msra.mxu0 0.0
      %1101 = vmatprep.subr.mxu0 0.0
      %1102 = vmatpush1.msra.mxu0 0.0
      %1103 = vmatprep.subr.mxu0 0.0
      %1104 = vmatpush1.msra.mxu0 0.0
      %1105 = vmatprep.subr.mxu0 0.0
      %1106 = vmatpush1.msra.mxu0 0.0
      %1107 = vmatprep.subr.mxu0 0.0
      %1108 = vmatpush1.msra.mxu0 0.0
      %1109 = vmatprep.subr.mxu0 0.0
      %1110 = vmatpush1.msra.mxu0 0.0
      %1111 = vmatprep.subr.mxu0 0.0
      %1112 = vmatpush1.msra.mxu0 0.0
      %1113 = vmatprep.subr.mxu0 0.0
      %1114 = vmatpush1.msra.mxu0 0.0
      %1115 = vmatprep.subr.mxu0 0.0
      %v1116 = vand.u32 %v232, 4294901760
      %v1117 = vsub.f32 %v232, %v1116
      %v1118 = vand.u32 %v1117, 4294901760
      %1119 = vmatpush1.msra.mxu0 %v1118
      %1120 = vmatprep.subr.mxu0 0.0
      %1121 = vmatpush2.msra.mxu0 0.0
      %1122 = vmatprep.subr.mxu0 0.0
      %1123 = vmatpush2.msra.mxu0 0.0
      %1124 = vmatprep.subr.mxu0 0.0
      %1125 = vmatpush2.msra.mxu0 0.0
      %1126 = vmatprep.subr.mxu0 0.0
      %1127 = vmatpush2.msra.mxu0 0.0
      %1128 = vmatprep.subr.mxu0 0.0
      %1129 = vmatpush2.msra.mxu0 0.0
      %1130 = vmatprep.subr.mxu0 0.0
      %1131 = vmatpush2.msra.mxu0 0.0
      %1132 = vmatprep.subr.mxu0 0.0
      %1133 = vmatpush2.msra.mxu0 0.0
      %1134 = vmatprep.subr.mxu0 0.0
      %1135 = vmatpush2.msra.mxu0 0.0
      %1136 = vmatprep.subr.mxu0 0.0
      %1137 = vmatpush2.msra.mxu0 0.0
      %1138 = vmatprep.subr.mxu0 0.0
      %1139 = vmatpush2.msra.mxu0 0.0
      %1140 = vmatprep.subr.mxu0 0.0
      %1141 = vmatpush2.msra.mxu0 0.0
      %1142 = vmatprep.subr.mxu0 0.0
      %1143 = vmatpush2.msra.mxu0 0.0
      %1144 = vmatprep.subr.mxu0 0.0
      %1145 = vmatpush2.msra.mxu0 0.0
      %1146 = vmatprep.subr.mxu0 0.0
      %1147 = vmatpush2.msra.mxu0 0.0
      %1148 = vmatprep.subr.mxu0 0.0
      %1149 = vmatpush2.msra.mxu0 0.0
      %1150 = vmatprep.subr.mxu0 0.0
      %1151 = vmatpush2.msra.mxu0 0.0
      %1152 = vmatprep.mubr.f32.mxu0 0.0
      %v1153 = vand.u32 %v235, 4294901760
      %1154 = vmatmul.mubr.f32.gmra.mxu0 %v1153
      %v1155 = vpop.f32.mrf.mxu0
      %v1156 = vadd.f32 %v1074, %v1155
      %v1157 = vpop.f32.mrf.mxu0
      %1158 = vmatprep.mubr.f32.mxu0 0.0
      %v1159 = vand.u32 %v238, 4294901760
      %1160 = vmatmul.mubr.f32.gmra.mxu0 %v1159
      %v1161 = vpop.f32.mrf.mxu0
      %v1162 = vadd.f32 %v1082, %v1161
      %v1163 = vpop.f32.mrf.mxu0
      %1164 = vdwg.mxu0
      %1165 = vmatprep.subr.mxu0 0.0
      %1166 = vmatpush1.msra.mxu0 0.0
      %1167 = vmatprep.subr.mxu0 0.0
      %1168 = vmatpush1.msra.mxu0 0.0
      %1169 = vmatprep.subr.mxu0 0.0
      %1170 = vmatpush1.msra.mxu0 0.0
      %1171 = vmatprep.subr.mxu0 0.0
      %1172 = vmatpush1.msra.mxu0 0.0
      %1173 = vmatprep.subr.mxu0 0.0
      %1174 = vmatpush1.msra.mxu0 0.0
      %1175 = vmatprep.subr.mxu0 0.0
      %1176 = vmatpush1.msra.mxu0 0.0
      %1177 = vmatprep.subr.mxu0 0.0
      %1178 = vmatpush1.msra.mxu0 0.0
      %1179 = vmatprep.subr.mxu0 0.0
      %1180 = vmatpush1.msra.mxu0 0.0
      %1181 = vmatprep.subr.mxu0 0.0
      %1182 = vmatpush1.msra.mxu0 0.0
      %1183 = vmatprep.subr.mxu0 0.0
      %1184 = vmatpush1.msra.mxu0 0.0
      %1185 = vmatprep.subr.mxu0 0.0
      %1186 = vmatpush1.msra.mxu0 0.0
      %1187 = vmatprep.subr.mxu0 0.0
      %1188 = vmatpush1.msra.mxu0 0.0
      %1189 = vmatprep.subr.mxu0 0.0
      %1190 = vmatpush1.msra.mxu0 0.0
      %1191 = vmatprep.subr.mxu0 0.0
      %1192 = vmatpush1.msra.mxu0 0.0
      %1193 = vmatprep.subr.mxu0 0.0
      %1194 = vmatpush1.msra.mxu0 0.0
      %1195 = vmatprep.subr.mxu0 0.0
      %v1196 = vand.u32 %v232, 4294901760
      %1197 = vmatpush1.msra.mxu0 %v1196
      %1198 = vmatprep.subr.mxu0 0.0
      %1199 = vmatpush2.msra.mxu0 0.0
      %1200 = vmatprep.subr.mxu0 0.0
      %1201 = vmatpush2.msra.mxu0 0.0
      %1202 = vmatprep.subr.mxu0 0.0
      %1203 = vmatpush2.msra.mxu0 0.0
      %1204 = vmatprep.subr.mxu0 0.0
      %1205 = vmatpush2.msra.mxu0 0.0
      %1206 = vmatprep.subr.mxu0 0.0
      %1207 = vmatpush2.msra.mxu0 0.0
      %1208 = vmatprep.subr.mxu0 0.0
      %1209 = vmatpush2.msra.mxu0 0.0
      %1210 = vmatprep.subr.mxu0 0.0
      %1211 = vmatpush2.msra.mxu0 0.0
      %1212 = vmatprep.subr.mxu0 0.0
      %1213 = vmatpush2.msra.mxu0 0.0
      %1214 = vmatprep.subr.mxu0 0.0
      %1215 = vmatpush2.msra.mxu0 0.0
      %1216 = vmatprep.subr.mxu0 0.0
      %1217 = vmatpush2.msra.mxu0 0.0
      %1218 = vmatprep.subr.mxu0 0.0
      %1219 = vmatpush2.msra.mxu0 0.0
      %1220 = vmatprep.subr.mxu0 0.0
      %1221 = vmatpush2.msra.mxu0 0.0
      %1222 = vmatprep.subr.mxu0 0.0
      %1223 = vmatpush2.msra.mxu0 0.0
      %1224 = vmatprep.subr.mxu0 0.0
      %1225 = vmatpush2.msra.mxu0 0.0
      %1226 = vmatprep.subr.mxu0 0.0
      %1227 = vmatpush2.msra.mxu0 0.0
      %1228 = vmatprep.subr.mxu0 0.0
      %1229 = vmatpush2.msra.mxu0 0.0
      %1230 = vmatprep.mubr.f32.mxu0 0.0
      %v1231 = vand.u32 %v235, 4294901760
      %1232 = vmatmul.mubr.f32.gmra.mxu0 %v1231
      %v1233 = vpop.f32.mrf.mxu0
      %v1234 = vadd.f32 %v1156, %v1233
      %v1235 = vpop.f32.mrf.mxu0
      %1236 = vmatprep.mubr.f32.mxu0 0.0
      %v1237 = vand.u32 %v238, 4294901760
      %1238 = vmatmul.mubr.f32.gmra.mxu0 %v1237
      %v1239 = vpop.f32.mrf.mxu0
      %v1240 = vadd.f32 %v1162, %v1239
      %v1241 = vpop.f32.mrf.mxu0
      %1242 = vdwg.mxu0
      %vm1243 = vcmask 23552
      %1244 = vst.msk [vmem:[%s214] sm:$0xff] %vm1243, %v743
      %1245 = vst.msk [vmem:[%s214 + $0x8] sm:$0xff] %vm1243, %v750
      %1246 = vst.msk [vmem:[%s220] sm:$0xff] %vm1243, %v745
      %1247 = vst.msk [vmem:[%s220 + $0x8] sm:$0xff] %vm1243, %v752
      %vm1248 = vcmask 15360
      %1249 = vst.msk [vmem:[%s226] sm:$0xff] %vm1248, %v1234
      %1250 = vst.msk [vmem:[%s226 + $0x8] sm:$0xff] %vm1248, %v1240
      %s1251 = smul.u32 2, %s16
      %p1252 = scmp.lt.s32.totalorder %s1251, 3
      %s1253 = scalar_select %p1252, %s1251, 3
      %s1254 = smul.addr %s1253, 8
      %s1255 = scalar_lea.vmem %s2, %s1254
      %s1256 = smul.u32 2, %s16
      %p1257 = scmp.lt.s32.totalorder %s1256, 3
      %s1258 = scalar_select %p1257, %s1256, 3
      %s1259 = smul.addr %s1258, 8
      %s1260 = scalar_lea.vmem %s3, %s1259
      %s1261 = smul.u32 2, %s16
      %p1262 = scmp.lt.s32.totalorder %s1261, 3
      %s1263 = scalar_select %p1262, %s1261, 3
      %s1264 = smul.addr %s1263, 8
      %s1265 = scalar_lea.vmem %s4, %s1264
      // Predicated region
      $region29: #{tpu_custom_call.1} parent=27 // pred_check
        %p1266 = pneg %p81
      $region30: #{tpu_custom_call.1} parent=27 // pred_check_branch
        %1268 = sbr.rel (%p1266) target = $region32
      $region31: #{tpu_custom_call.1} parent=27 // pred_region
        %s1269 = smul.u32 2, %s16
      $region32: #{tpu_custom_call.1} parent=27 // pred_fallthru
        _
      // Predicated region
      $region33: #{tpu_custom_call.1} parent=27 // pred_check
        %p1270 = pneg %p107
      $region34: #{tpu_custom_call.1} parent=27 // pred_check_branch
        %1272 = sbr.rel (%p1270) target = $region36
      $region35: #{tpu_custom_call.1} parent=27 // pred_region
        %s1273 = smul.u32 2, %s16
      $region36: #{tpu_custom_call.1} parent=27 // pred_fallthru
        _
      // Predicated region
      $region37: #{tpu_custom_call.1} parent=27 // pred_check
        %p1274 = pneg %p133
      $region38: #{tpu_custom_call.1} parent=27 // pred_check_branch
        %1276 = sbr.rel (%p1274) target = $region40
      $region39: #{tpu_custom_call.1} parent=27 // pred_region
        %s1277 = smul.u32 2, %s16
      $region40: #{tpu_custom_call.1} parent=27 // pred_fallthru
        _
    $region28: #{tpu_custom_call.1} parent=5 // pred_fallthru
      _
    %p1278 = scmp.le.s32.totalorder 2, %s11
    // Predicated region
    $region41: #{tpu_custom_call.1} parent=5 // pred_check
      %p1279 = pneg %p1278
    $region42: #{tpu_custom_call.1} parent=5 // pred_check_branch
      %1281 = sbr.rel (%p1279) target = $region44
    $region43: #{tpu_custom_call.1} parent=5 // pred_region
      %s1282 = ssub.s32 %s11, 2
      // Predicated region
      $region45: #{tpu_custom_call.1} parent=43 // pred_check
        %p1283 = pneg %p87
      $region46: #{tpu_custom_call.1} parent=43 // pred_check_branch
        %1285 = sbr.rel (%p1283) target = $region48
      $region47: #{tpu_custom_call.1} parent=43 // pred_region
        %s1286 = smul.u32 2, %s17
        %p1287 = scmp.lt.s32.totalorder %s1286, 3
        %s1288 = scalar_select %p1287, %s1286, 3
        %s1289 = smul.addr %s1288, 8
        %s1290 = scalar_lea.vmem %s2, %s1289
      $region48: #{tpu_custom_call.1} parent=43 // pred_fallthru
        _
      // Predicated region
      $region49: #{tpu_custom_call.1} parent=43 // pred_check
        %p1291 = pneg %p113
      $region50: #{tpu_custom_call.1} parent=43 // pred_check_branch
        %1293 = sbr.rel (%p1291) target = $region52
      $region51: #{tpu_custom_call.1} parent=43 // pred_region
        %s1294 = smul.u32 2, %s17
        %p1295 = scmp.lt.s32.totalorder %s1294, 3
        %s1296 = scalar_select %p1295, %s1294, 3
        %s1297 = smul.addr %s1296, 8
        %s1298 = scalar_lea.vmem %s3, %s1297
      $region52: #{tpu_custom_call.1} parent=43 // pred_fallthru
        _
      // Predicated region
      $region53: #{tpu_custom_call.1} parent=43 // pred_check
        %p1299 = pneg %p139
      $region54: #{tpu_custom_call.1} parent=43 // pred_check_branch
        %1301 = sbr.rel (%p1299) target = $region56
      $region55: #{tpu_custom_call.1} parent=43 // pred_region
        %s1302 = smul.u32 2, %s17
        %p1303 = scmp.lt.s32.totalorder %s1302, 3
        %s1304 = scalar_select %p1303, %s1302, 3
        %s1305 = smul.addr %s1304, 8
        %s1306 = scalar_lea.vmem %s4, %s1305
      $region56: #{tpu_custom_call.1} parent=43 // pred_fallthru
        _
    $region44: #{tpu_custom_call.1} parent=5 // pred_fallthru
      _
  $region6: #{tpu_custom_call.1} parent=0 // loop_footer
    %s15 = sadd.s32 1, %s11
  $region7: #{tpu_custom_call.1} parent=0 // loop_footer_branch
    %10 = sbr.rel target = $region3
  $region8: #{tpu_custom_call.1} parent=0 // loop_exit
    _

</llo_original>
